<compile_context>
chip_gen: v7x
topology: tpu7x:2x2x1
jax: 0.10.0
libtpu: 0.0.40
codegen_flags: <defaults>
</compile_context>

<pallas_src>
import functools

import numpy as np
import jax
import jax.numpy as jnp
from jax import lax
from jax.experimental import pallas as pl
from jax.experimental.pallas import tpu as pltpu

_BN_EPS = 1e-3


# ----------------------------------------------------------------------------
# Kernel 1: cluster_scatter (average) — sorted segment scatter-add of [xyz | 1]
# into a resident (V_pad, 4) accumulator; finalize mean with approx reciprocal.
# ----------------------------------------------------------------------------
def _voxel_mean_kernel(ids_ref, pts_ref, mean_ref):
    g = pl.program_id(0)
    tile_m = pts_ref.shape[0]

    @pl.when(g == 0)
    def _init():
        mean_ref[...] = jnp.zeros_like(mean_ref)

    def body(t, carry):
        vid = ids_ref[g * tile_m + t]                       # SMEM scalar read
        row = pts_ref[pl.ds(t, 1), :]                       # (1, 4)
        mean_ref[pl.ds(vid, 1), :] = mean_ref[pl.ds(vid, 1), :] + row
        return carry

    lax.fori_loop(0, tile_m, body, 0)

    @pl.when(g == pl.num_programs(0) - 1)
    def _finalize():
        sums = mean_ref[...]
        cnt = jnp.maximum(sums[:, 3:4], 1.0)
        mean_ref[...] = sums * pl.reciprocal(cnt, approx=True)


def voxel_mean_scatter(pts, ids, v_pad, tile_m):
    m_pad = pts.shape[0]
    return pl.pallas_call(
        _voxel_mean_kernel,
        grid_spec=pltpu.PrefetchScalarGridSpec(
            num_scalar_prefetch=1,
            grid=(m_pad // tile_m,),
            in_specs=[pl.BlockSpec((tile_m, 4), lambda i, ids: (i, 0))],
            out_specs=pl.BlockSpec((v_pad, 4), lambda i, ids: (0, 0)),
        ),
        out_shape=jax.ShapeDtypeStruct((v_pad, 4), jnp.float32),
        compiler_params=pltpu.CompilerParams(
            dimension_semantics=("arbitrary",)),
    )(ids, pts)


# ----------------------------------------------------------------------------
# Kernel 2: fused decoration + Linear (bf16 MXU) + BN batch statistics
# (pass 1 of the two-pass BatchNorm).  Tiled over M; emits pre-BN y and the
# folded per-channel scale/shift at the last tile.
# ----------------------------------------------------------------------------
def _decorate_linear_stats_kernel(feat_ref, pmean_ref, vcen_ref, w_ref,
                                  g_ref, b_ref,
                                  y_ref, scale_ref, shift_ref,
                                  sum_sc, sq_sc, *, m_real):
    i = pl.program_id(0)

    @pl.when(i == 0)
    def _init():
        sum_sc[...] = jnp.zeros_like(sum_sc)
        sq_sc[...] = jnp.zeros_like(sq_sc)

    feats = feat_ref[...].astype(jnp.float32)               # (TM, Craw)
    xyz = feats[:, 0:3]
    f_cluster = xyz - pmean_ref[...]                        # (TM, 3)
    f_center = xyz - vcen_ref[...]                          # (TM, 3)
    x = jnp.concatenate([feats, f_cluster, f_center], axis=1)   # (TM, Craw+6)

    y = jnp.dot(x.astype(jnp.bfloat16), w_ref[...].astype(jnp.bfloat16),
                preferred_element_type=jnp.float32)         # (TM, Cout) f32
    y_ref[...] = y
    sum_sc[...] += jnp.sum(y, axis=0, keepdims=True)
    sq_sc[...] += jnp.sum(y * y, axis=0, keepdims=True)

    @pl.when(i == pl.num_programs(0) - 1)
    def _finalize():
        inv_m = 1.0 / m_real
        mu = sum_sc[...] * inv_m
        var = jnp.maximum(sq_sc[...] * inv_m - mu * mu, 0.0)   # biased variance
        scale = g_ref[...] * lax.rsqrt(var + _BN_EPS)
        scale_ref[...] = scale
        shift_ref[...] = b_ref[...] - mu * scale


def decorate_linear_stats(feats, pmean, vcenter, w, gamma, beta, m_real, tile_m):
    m_pad, craw = feats.shape
    cin, cout = w.shape
    kern = functools.partial(_decorate_linear_stats_kernel, m_real=float(m_real))
    return pl.pallas_call(
        kern,
        grid=(m_pad // tile_m,),
        in_specs=[pl.BlockSpec((tile_m, craw), lambda i: (i, 0)),
                  pl.BlockSpec((tile_m, 3), lambda i: (i, 0)),
                  pl.BlockSpec((tile_m, 3), lambda i: (i, 0)),
                  pl.BlockSpec((cin, cout), lambda i: (0, 0)),
                  pl.BlockSpec((1, cout), lambda i: (0, 0)),
                  pl.BlockSpec((1, cout), lambda i: (0, 0))],
        out_specs=(pl.BlockSpec((tile_m, cout), lambda i: (i, 0)),
                   pl.BlockSpec((1, cout), lambda i: (0, 0)),
                   pl.BlockSpec((1, cout), lambda i: (0, 0))),
        out_shape=(jax.ShapeDtypeStruct((m_pad, cout), jnp.float32),
                   jax.ShapeDtypeStruct((1, cout), jnp.float32),
                   jax.ShapeDtypeStruct((1, cout), jnp.float32)),
        scratch_shapes=[pltpu.VMEM((1, cout), jnp.float32),
                        pltpu.VMEM((1, cout), jnp.float32)],
        compiler_params=pltpu.CompilerParams(
            dimension_semantics=("arbitrary",),
            vmem_limit_bytes=32 * 1024 * 1024),
    )(feats, pmean, vcenter, w, gamma, beta)


# Same as kernel 2 without the decoration (only used for feat_channels with >1 layer).
def _linear_stats_kernel(x_ref, w_ref, g_ref, b_ref,
                         y_ref, scale_ref, shift_ref,
                         sum_sc, sq_sc, *, m_real):
    i = pl.program_id(0)

    @pl.when(i == 0)
    def _init():
        sum_sc[...] = jnp.zeros_like(sum_sc)
        sq_sc[...] = jnp.zeros_like(sq_sc)

    y = jnp.dot(x_ref[...].astype(jnp.bfloat16), w_ref[...].astype(jnp.bfloat16),
                preferred_element_type=jnp.float32)
    y_ref[...] = y
    sum_sc[...] += jnp.sum(y, axis=0, keepdims=True)
    sq_sc[...] += jnp.sum(y * y, axis=0, keepdims=True)

    @pl.when(i == pl.num_programs(0) - 1)
    def _finalize():
        inv_m = 1.0 / m_real
        mu = sum_sc[...] * inv_m
        var = jnp.maximum(sq_sc[...] * inv_m - mu * mu, 0.0)
        scale = g_ref[...] * lax.rsqrt(var + _BN_EPS)
        scale_ref[...] = scale
        shift_ref[...] = b_ref[...] - mu * scale


def linear_stats(x, w, gamma, beta, m_real, tile_m):
    m_pad, cin = x.shape
    cout = w.shape[1]
    kern = functools.partial(_linear_stats_kernel, m_real=float(m_real))
    return pl.pallas_call(
        kern,
        grid=(m_pad // tile_m,),
        in_specs=[pl.BlockSpec((tile_m, cin), lambda i: (i, 0)),
                  pl.BlockSpec((cin, cout), lambda i: (0, 0)),
                  pl.BlockSpec((1, cout), lambda i: (0, 0)),
                  pl.BlockSpec((1, cout), lambda i: (0, 0))],
        out_specs=(pl.BlockSpec((tile_m, cout), lambda i: (i, 0)),
                   pl.BlockSpec((1, cout), lambda i: (0, 0)),
                   pl.BlockSpec((1, cout), lambda i: (0, 0))),
        out_shape=(jax.ShapeDtypeStruct((m_pad, cout), jnp.float32),
                   jax.ShapeDtypeStruct((1, cout), jnp.float32),
                   jax.ShapeDtypeStruct((1, cout), jnp.float32)),
        scratch_shapes=[pltpu.VMEM((1, cout), jnp.float32),
                        pltpu.VMEM((1, cout), jnp.float32)],
        compiler_params=pltpu.CompilerParams(
            dimension_semantics=("arbitrary",),
            vmem_limit_bytes=32 * 1024 * 1024),
    )(x, w, gamma, beta)


# ----------------------------------------------------------------------------
# Kernel 3: BN apply + ReLU (pass 2 of BN) fused with the pfn_scatter 'max':
# sorted segment scatter-max into a resident (V_pad, Cout) accumulator.
# Emits both point_feats and per-voxel max from one pallas_call.
# ----------------------------------------------------------------------------
def _bn_relu_scatter_kernel(ids_ref, y_ref, scale_ref, shift_ref,
                            pfeat_ref, vmax_ref):
    g = pl.program_id(0)
    tile_m = y_ref.shape[0]

    @pl.when(g == 0)
    def _init():
        vmax_ref[...] = jnp.full(vmax_ref.shape, -jnp.inf, dtype=jnp.float32)

    p = jnp.maximum(y_ref[...] * scale_ref[...] + shift_ref[...], 0.0)
    pfeat_ref[...] = p

    def body(t, carry):
        vid = ids_ref[g * tile_m + t]
        row = pfeat_ref[pl.ds(t, 1), :]                     # (1, Cout)
        cur = vmax_ref[pl.ds(vid, 1), :]
        vmax_ref[pl.ds(vid, 1), :] = jnp.maximum(cur, row)
        return carry

    lax.fori_loop(0, tile_m, body, 0)


def bn_relu_scatter_max(y, scale, shift, ids, v_pad, tile_m):
    m_pad, cout = y.shape
    return pl.pallas_call(
        _bn_relu_scatter_kernel,
        grid_spec=pltpu.PrefetchScalarGridSpec(
            num_scalar_prefetch=1,
            grid=(m_pad // tile_m,),
            in_specs=[pl.BlockSpec((tile_m, cout), lambda i, ids: (i, 0)),
                      pl.BlockSpec((1, cout), lambda i, ids: (0, 0)),
                      pl.BlockSpec((1, cout), lambda i, ids: (0, 0))],
            out_specs=(pl.BlockSpec((tile_m, cout), lambda i, ids: (i, 0)),
                       pl.BlockSpec((v_pad, cout), lambda i, ids: (0, 0))),
        ),
        out_shape=(jax.ShapeDtypeStruct((m_pad, cout), jnp.float32),
                   jax.ShapeDtypeStruct((v_pad, cout), jnp.float32)),
        compiler_params=pltpu.CompilerParams(
            dimension_semantics=("arbitrary",),
            vmem_limit_bytes=32 * 1024 * 1024),
    )(ids, y, scale, shift)


# ----------------------------------------------------------------------------
# Parameters (deterministic, synthetic) and the full forward pass
# ----------------------------------------------------------------------------
def init_params(key, in_channels=4, feat_channels=(64,)):
    c_in = in_channels + 3 + 3              # + cluster center + voxel center
    dims = [c_in] + list(feat_channels)
    params = []
    for i in range(len(dims) - 1):
        fin = dims[i] if i == 0 else dims[i] * 2    # concat doubles later inputs
        fout = dims[i + 1]
        key, k = jax.random.split(key)
        w = jax.random.normal(k, (fin, fout), jnp.float32) * 0.1
        gamma = jnp.ones((1, fout), jnp.float32)    # torch BN default init
        beta = jnp.zeros((1, fout), jnp.float32)
        params.append((w, gamma, beta))
    return params


def dynamic_pillar_feature_net_forward(features, coors, params,
                                       voxel_size=(0.2, 0.2, 4),
                                       point_cloud_range=(0, -40, -3, 70.4, 40, 1),
                                       tile_m=128):
    vx, vy, vz = voxel_size
    x_off = vx / 2 + point_cloud_range[0]
    y_off = vy / 2 + point_cloud_range[1]
    z_off = vz / 2 + point_cloud_range[2]

    M, craw = features.shape

    # ---- host-side voxel bookkeeping (data-dependent output sizes) ----
    # TODO(synk): DynamicScatter drops out-of-range (-1) coordinates; add that
    # filter and move unique/sort onto the device for production-scale M.
    coors_np = np.asarray(coors)
    uniq, inv = np.unique(coors_np, axis=0, return_inverse=True)
    inv = np.asarray(inv).reshape(-1).astype(np.int32)
    V = int(uniq.shape[0])

    order = np.argsort(inv, kind="stable").astype(np.int32)   # sort points by voxel id
    rank = np.argsort(order).astype(np.int32)                 # sorted -> original order

    m_pad = ((M + tile_m - 1) // tile_m) * tile_m
    v_pad = ((V + 1 + 7) // 8) * 8          # +1 dummy row collects padded points

    feats_np = np.zeros((m_pad, craw), np.float32)
    feats_np[:M] = np.asarray(features, np.float32)[order]
    ids_np = np.full((m_pad,), V, np.int32)
    ids_np[:M] = inv[order]
    coors_s = coors_np[order].astype(np.float32)
    vcen_np = np.zeros((m_pad, 3), np.float32)                 # padded rows stay 0
    vcen_np[:M, 0] = coors_s[:, 2] * vx + x_off
    vcen_np[:M, 1] = coors_s[:, 1] * vy + y_off
    vcen_np[:M, 2] = coors_s[:, 0] * vz + z_off

    feats_sorted = jnp.asarray(feats_np)
    ids_sorted = jnp.asarray(ids_np)
    vcenter = jnp.asarray(vcen_np)
    valid = jnp.asarray((np.arange(m_pad) < M).astype(np.float32))[:, None]

    # ---- cluster_scatter: per-voxel mean via sorted segment scatter-add ----
    pts = jnp.concatenate(
        [feats_sorted[:, :3], jnp.ones((m_pad, 1), jnp.float32)], axis=1)
    voxel_mean = voxel_mean_scatter(pts, ids_sorted, v_pad, tile_m)   # (V_pad, 4)

    # map_voxel_center_to_point: tiny per-point gather (glue, no S^T matmul).
    pmean = jnp.take(voxel_mean[:, :3], ids_sorted, axis=0)           # (m_pad, 3)

    # ---- PFN layers ----
    x = None
    point_feats_s = None
    voxel_feats_pad = None
    for i, (w, gamma, beta) in enumerate(params):
        if i == 0:
            y, scale, shift = decorate_linear_stats(
                feats_sorted, pmean, vcenter, w, gamma, beta, M, tile_m)
        else:
            y, scale, shift = linear_stats(x, w, gamma, beta, M, tile_m)
        point_feats_s, voxel_feats_pad = bn_relu_scatter_max(
            y, scale, shift, ids_sorted, v_pad, tile_m)
        if i != len(params) - 1:
            feat_per_point = jnp.take(voxel_feats_pad, ids_sorted, axis=0)
            x = jnp.where(valid > 0.0,
                          jnp.concatenate([point_feats_s, feat_per_point], axis=1),
                          0.0)

    voxel_feats = voxel_feats_pad[:V]
    point_feats = jnp.take(point_feats_s[:M], jnp.asarray(rank), axis=0)
    voxel_coors = jnp.asarray(uniq.astype(np.int32))
    return voxel_feats, voxel_coors, point_feats


if __name__ == "__main__":
    key = jax.random.PRNGKey(0)
    k_feat, k_c0, k_c1, k_c2, k_param = jax.random.split(key, 5)

    M = 256                 # number of points
    in_channels = 4         # x, y, z, reflectance
    features = jax.random.normal(k_feat, (M, in_channels), jnp.float32)
    c0 = jax.random.randint(k_c0, (M,), 0, 2, jnp.int32)   # batch / z index
    c1 = jax.random.randint(k_c1, (M,), 0, 4, jnp.int32)   # y index
    c2 = jax.random.randint(k_c2, (M,), 0, 4, jnp.int32)   # x index
    coors = jnp.stack([c0, c1, c2], axis=1)                 # (M, 3)

    params = init_params(k_param, in_channels=in_channels, feat_channels=(64,))

    voxel_feats, voxel_coors, point_feats = dynamic_pillar_feature_net_forward(
        features, coors, params)
    jax.block_until_ready((voxel_feats, voxel_coors, point_feats))

    assert point_feats.shape == (M, 64)
    assert voxel_feats.shape == (voxel_coors.shape[0], 64)
    assert bool(jnp.all(jnp.isfinite(voxel_feats)))
    print("KERNEL_OK")
</pallas_src>

<mosaic_0001>
module attributes {stable_mosaic.version = 11 : i64} {
  func.func @_voxel_mean_kernel(%arg0: i32, %arg1: memref<256xi32, #tpu.memory_space<smem>>, %arg2: memref<128x4xf32, #tpu.memory_space<vmem>>, %arg3: memref<40x4xf32, #tpu.memory_space<vmem>>) attributes {dimension_semantics = [#tpu.dimension_semantics<arbitrary>], iteration_bounds = array<i64: 2>, scalar_prefetch = 1 : i64, scratch_operands = 0 : i64, tpu.core_type = #tpu.core_type<tc>, window_params = [{transform_indices = @transform_0, window_bounds = array<i64: 128, 4>}, {pipeline_mode = #tpu.pipeline_mode<synchronous>, transform_indices = @transform_1, window_bounds = array<i64: 40, 4>}]} {
    %c0_i32 = arith.constant 0 : i32
    %0 = arith.cmpi eq, %arg0, %c0_i32 : i32
    %1 = arith.extui %0 : i1 to i32
    %c0_i32_0 = arith.constant 0 : i32
    %2 = arith.cmpi ne, %1, %c0_i32_0 : i32
    scf.if %2 {
      %cst = arith.constant 0.000000e+00 : f32
      %7 = vector.broadcast %cst : f32 to vector<40x4xf32>
      %c0 = arith.constant 0 : index
      %c0_5 = arith.constant 0 : index
      %8 = vector.load %arg3[%c0, %c0_5] : memref<40x4xf32, #tpu.memory_space<vmem>>, vector<40x4xf32>
      tpu.vector_store %arg3[%c0, %c0_5], %7 {strides = array<i32>} : memref<40x4xf32, #tpu.memory_space<vmem>>, vector<40x4xf32>,
    } else {
    }
    %c0_i32_1 = arith.constant 0 : i32
    %c128_i32 = arith.constant 128 : i32
    %3 = arith.addi %c0_i32_1, %c128_i32 : i32
    %c1_i32 = arith.constant 1 : i32
    scf.for %arg4 = %c0_i32_1 to %3 step %c1_i32  : i32 {
      %c128_i32_5 = arith.constant 128 : i32
      %7 = arith.muli %arg0, %c128_i32_5 : i32
      %8 = arith.addi %7, %arg4 : i32
      %9 = arith.index_cast %8 : i32 to index
      %10 = memref.load %arg1[%9] : memref<256xi32, #tpu.memory_space<smem>>
      %11 = arith.index_cast %arg4 : i32 to index
      %c0 = arith.constant 0 : index
      %12 = vector.load %arg2[%11, %c0] : memref<128x4xf32, #tpu.memory_space<vmem>>, vector<1x4xf32>
      %13 = arith.index_cast %10 : i32 to index
      %c0_6 = arith.constant 0 : index
      %14 = vector.load %arg3[%13, %c0_6] : memref<40x4xf32, #tpu.memory_space<vmem>>, vector<1x4xf32>
      %15 = arith.addf %14, %12 : vector<1x4xf32>
      %16 = arith.index_cast %10 : i32 to index
      %c0_7 = arith.constant 0 : index
      %17 = vector.load %arg3[%16, %c0_7] : memref<40x4xf32, #tpu.memory_space<vmem>>, vector<1x4xf32>
      tpu.vector_store %arg3[%16, %c0_7], %15 {strides = array<i32>} : memref<40x4xf32, #tpu.memory_space<vmem>>, vector<1x4xf32>,
    }
    %c128_i32_2 = arith.constant 128 : i32
    %c1_i32_3 = arith.constant 1 : i32
    %4 = arith.cmpi eq, %arg0, %c1_i32_3 : i32
    %5 = arith.extui %4 : i1 to i32
    %c0_i32_4 = arith.constant 0 : i32
    %6 = arith.cmpi ne, %5, %c0_i32_4 : i32
    scf.if %6 {
      %c0 = arith.constant 0 : index
      %c0_5 = arith.constant 0 : index
      %7 = vector.load %arg3[%c0, %c0_5] : memref<40x4xf32, #tpu.memory_space<vmem>>, vector<40x4xf32>
      %8 = vector.extract_strided_slice %7 {offsets = [0, 3], sizes = [40, 1], strides = [1, 1]} : vector<40x4xf32> to vector<40x1xf32>
      %cst = arith.constant 1.000000e+00 : f32
      %9 = vector.broadcast %cst : f32 to vector<40x1xf32>
      %10 = arith.maximumf %8, %9 : vector<40x1xf32>
      %11 = tpu.reciprocal %10 {approx = true} : vector<40x1xf32> -> vector<40x1xf32>
      %12 = vector.broadcast %11 : vector<40x1xf32> to vector<40x4xf32>
      %13 = arith.mulf %7, %12 : vector<40x4xf32>
      %c0_6 = arith.constant 0 : index
      %c0_7 = arith.constant 0 : index
      %14 = vector.load %arg3[%c0_6, %c0_7] : memref<40x4xf32, #tpu.memory_space<vmem>>, vector<40x4xf32>
      tpu.vector_store %arg3[%c0_6, %c0_7], %13 {strides = array<i32>} : memref<40x4xf32, #tpu.memory_space<vmem>>, vector<40x4xf32>,
    } else {
    }
    return
  }
  func.func @transform_0(%arg0: i32, %arg1: memref<256xi32, #tpu.memory_space<smem>>) -> (i32, i32) {
    %c0_i32 = arith.constant 0 : i32
    %c0_i32_0 = arith.constant 0 : i32
    return %arg0, %c0_i32 : i32, i32
  }
  func.func @transform_1(%arg0: i32, %arg1: memref<256xi32, #tpu.memory_space<smem>>) -> (i32, i32) {
    %c0_i32 = arith.constant 0 : i32
    %c0_i32_0 = arith.constant 0 : i32
    %c0_i32_1 = arith.constant 0 : i32
    return %c0_i32, %c0_i32_0 : i32, i32
  }
}

</mosaic_0001>

<llo_original>
// kernel: tpu_custom_call.1
$region0: #{tpu_custom_call.1}
  #allocation0 [shape = 'u32[]', space=smem, size = 0x4, offset = 0x4, fixed_abs, tag = 'smem constant byte address 0x4 - core index']
  #allocation1 [shape = 'u32[144,128]{1,0:T(1,128)}', space=vmem, size = 0x12000, scoped, tag = 'internal scratch']
  #allocation2 [shape = 's32[1]{0}', space=sflag, size = 0x4, scoped, tag = 'scoped memory for tpu_custom_call.1']
  #allocation3 [shape = 'u8[1024]{0}', space=smem, size = 0x400, scoped, tag = 'prefetched SMEM operand 0']
  %s0 = inlined_call_operand.vmem [shape: s32[256], index: 0, kind: input, shape index: {}]
  %s1 = inlined_call_operand.vmem [shape: f32[256,4], index: 1, kind: input, shape index: {}]
  %s2 = inlined_call_operand.vmem [shape: f32[40,4], index: 2, kind: output, shape index: {}]
  %s3 = sld [smem:[#allocation0]]
  $region52: #{tpu_custom_call.1} parent=0
    _
  %s5 = ssub.s32 1, %s3
  %s6 = scalar_select 0, %s5, %s3
  %s7 = sshll.u32 %s0, 4
  %s8 = int_to_ptr.vmem [resolvable:$true] %s7
  %10 = dma.vmem_to_smem %s8, 32, [#allocation3], [#allocation2]
  %11 = dma.done [#allocation2], 32
  %12 = sfence
  loop: start=0, step=1, limit=4
  $region2: #{tpu_custom_call.1} parent=0 // loop_pre_header
    _
  $region3: #{tpu_custom_call.1} parent=0 // loop_header
    %s14 = sphi 0, %s18
    %p15 = scmp.ge.s32.totalorder %s14, 4
    %s24 = sphi 0, %s26
    %s27 = sphi 0, %s24
    %s28 = sphi 0, %s27
    %s44 = sphi 0, %s28
    %s48 = sphi 0, %s48
    %s50 = sphi 0, %s48
    %s51 = sphi 0, %s50
    %s65 = sphi 0, %s51
  $region4: #{tpu_custom_call.1} parent=0 // loop_header_branch
    %17 = sbr.rel (%p15) target = $region8
  $region5: #{tpu_custom_call.1} parent=0 // loop_body
    %s19 = ssub.s32 %s14, 1
    %s20 = ssub.s32 %s14, 2
    %s21 = sadd.s32 %s14, 1
    %s22 = ssub.s32 %s14, %s21
    %p23 = scmp.eq.s32.totalorder %s22, 0
    %s25 = sadd.s32 %s24, 1
    %s26 = scalar_select %p23, %s24, %s25
    %p29 = pneg %p23
    %p30 = scmp.eq.s32.totalorder %s14, 1
    %p31 = por %p29, %p30
    %p32 = scmp.ne.s32.totalorder %s24, %s27
    %p33 = scmp.eq.s32.totalorder %s14, 0
    %p34 = por %p32, %p33
    %p35 = scmp.ne.s32.totalorder %s24, %s27
    %p36 = scmp.eq.s32.totalorder %s19, 1
    %p37 = por %p35, %p36
    %p38 = scmp.ne.s32.totalorder %s27, %s28
    %p39 = scmp.eq.s32.totalorder %s19, 0
    %p40 = por %p38, %p39
    %p41 = scmp.ne.s32.totalorder %s27, %s28
    %p42 = scmp.eq.s32.totalorder %s20, 1
    %p43 = por %p41, %p42
    %p45 = scmp.ne.s32.totalorder %s28, %s44
    %p46 = scmp.eq.s32.totalorder %s20, 0
    %p47 = por %p45, %p46
    %s49 = sadd.s32 %s48, 1
    %p52 = scmp.eq.s32.totalorder %s14, 1
    %p53 = scmp.ne.s32.totalorder %s48, %s50
    %p54 = scmp.eq.s32.totalorder %s14, 0
    %p55 = por %p53, %p54
    %p56 = scmp.ne.s32.totalorder %s48, %s50
    %p57 = scmp.eq.s32.totalorder %s19, 1
    %p58 = por %p56, %p57
    %p59 = scmp.ne.s32.totalorder %s50, %s51
    %p60 = scmp.eq.s32.totalorder %s19, 0
    %p61 = por %p59, %p60
    %p62 = scmp.ne.s32.totalorder %s50, %s51
    %p63 = scmp.eq.s32.totalorder %s20, 1
    %p64 = por %p62, %p63
    %p66 = scmp.ne.s32.totalorder %s51, %s65
    %p67 = scmp.eq.s32.totalorder %s20, 0
    %p68 = por %p66, %p67
    %p69 = scmp.le.s32.totalorder 1, %s14
    %p70 = scmp.lt.s32.totalorder %s14, 3
    %p71 = pnand %p69, %p70
    %p72 = pneg %p71
    // Predicated region
    $region9: #{tpu_custom_call.1} parent=5 // pred_check
      _
    $region10: #{tpu_custom_call.1} parent=5 // pred_check_branch
      %74 = sbr.rel (%p71) target = $region12
    $region11: #{tpu_custom_call.1} parent=5 // pred_region
      %s75 = ssub.s32 %s14, 1
    $region12: #{tpu_custom_call.1} parent=5 // pred_fallthru
      _
    %p76 = scmp.lt.s32.totalorder %s14, 2
    // Predicated region
    $region13: #{tpu_custom_call.1} parent=5 // pred_check
      %p77 = pneg %p76
    $region14: #{tpu_custom_call.1} parent=5 // pred_check_branch
      %79 = sbr.rel (%p77) target = $region16
    $region15: #{tpu_custom_call.1} parent=5 // pred_region
      // Predicated region
      $region17: #{tpu_custom_call.1} parent=15 // pred_check
        %p80 = pneg %p34
      $region18: #{tpu_custom_call.1} parent=15 // pred_check_branch
        %82 = sbr.rel (%p80) target = $region20
      $region19: #{tpu_custom_call.1} parent=15 // pred_region
        %s83 = smul.u32 16, %s14
        %p84 = scmp.lt.s32.totalorder %s83, 31
        %s85 = scalar_select %p84, %s83, 31
        %s86 = smul.addr %s85, 8
        %s87 = scalar_lea.vmem %s1, %s86
        %s88 = smul.u32 16, %s14
      $region20: #{tpu_custom_call.1} parent=15 // pred_fallthru
        _
    $region16: #{tpu_custom_call.1} parent=5 // pred_fallthru
      _
    %p89 = scmp.le.s32.totalorder 1, %s14
    %p90 = scmp.lt.s32.totalorder %s14, 3
    %p91 = pnand %p89, %p90
    %p92 = pneg %p91
    // Predicated region
    $region21: #{tpu_custom_call.1} parent=5 // pred_check
      _
    $region22: #{tpu_custom_call.1} parent=5 // pred_check_branch
      %94 = sbr.rel (%p91) target = $region24
    $region23: #{tpu_custom_call.1} parent=5 // pred_region
      %s95 = ssub.s32 %s14, 1
      %s96 = smul.u32 16, %s19
      %p97 = scmp.lt.s32.totalorder %s96, 31
      %s98 = scalar_select %p97, %s96, 31
      %s99 = smul.addr %s98, 8
      %s100 = scalar_lea.vmem %s1, %s99
      %p101 = pneg %p40
      %p102 = pneg %p37
      %p103 = pneg %p61
      %p104 = pneg %p58
      %s105 = smul.u32 16, %s19
      %p106 = scmp.lt.s32.totalorder %s105, 31
      %s107 = scalar_select %p106, %s105, 31
      %s108 = smul.addr %s107, 8
      %s109 = scalar_lea.vmem %s1, %s108
      %s110 = smul.u32 16, %s19
      %p111 = scmp.eq.s32.totalorder %s19, 0
      // Predicated region
      $region25: #{tpu_custom_call.1} parent=23 // pred_check
        %p112 = pneg %p111
      $region26: #{tpu_custom_call.1} parent=23 // pred_check_branch
        %114 = sbr.rel (%p112) target = $region28
      $region27: #{tpu_custom_call.1} parent=23 // pred_region
        %vm115 = vcmask 31744
        %116 = vst.msk [vmem:[%s2] sm:$0xff] %vm115, 0.0
        %117 = vst.msk [vmem:[%s2 + $0x8] sm:$0xff] %vm115, 0.0
        %118 = vst.msk [vmem:[%s2 + $0x10] sm:$0xff] %vm115, 0.0
        %119 = vst.msk [vmem:[%s2 + $0x18] sm:$0xff] %vm115, 0.0
        %120 = vst.msk [vmem:[%s2 + $0x20] sm:$0xff] %vm115, 0.0
      $region28: #{tpu_custom_call.1} parent=23 // pred_fallthru
        _
      loop: start=0, step=1, limit=128
      $region29: #{tpu_custom_call.1} parent=23 // loop_pre_header
        _
      $region30: #{tpu_custom_call.1} parent=23 // loop_header
        %s122 = sphi 0, %s126
        %p123 = scmp.ge.s32.totalorder %s122, 128
      $region31: #{tpu_custom_call.1} parent=23 // loop_header_branch
        %125 = sbr.rel (%p123) target = $region35
      $region32: #{tpu_custom_call.1} parent=23 // loop_body
        %s127 = smul.u32 %s19, 128
        %s128 = sadd.s32 %s127, %s122
        %s129 = sld [smem:[#allocation3 + %s128]]
        %s130 = scalar_lea.vmem %s109, %s122
        %v131 = vld [vmem:[%s130] sm:$0x1]
        %s132 = scalar_lea.vmem %s2, %s129
        %v133 = vld [vmem:[%s132] sm:$0x1]
        %v134 = vadd.f32 %v133, %v131
        %vm135 = vcmask 24576
        %136 = vst.msk [vmem:[%s132] sm:$0x1] %vm135, %v134
      $region33: #{tpu_custom_call.1} parent=23 // loop_footer
        %s126 = sadd.s32 1, %s122
      $region34: #{tpu_custom_call.1} parent=23 // loop_footer_branch
        %121 = sbr.rel target = $region30
      $region35: #{tpu_custom_call.1} parent=23 // loop_exit
        _
      %p137 = scmp.eq.s32.totalorder %s19, 1
      // Predicated region
      $region36: #{tpu_custom_call.1} parent=23 // pred_check
        %p138 = pneg %p137
      $region37: #{tpu_custom_call.1} parent=23 // pred_check_branch
        %140 = sbr.rel (%p138) target = $region39
      $region38: #{tpu_custom_call.1} parent=23 // pred_region
        %v141 = vld [vmem:[%s2] sm:$0xff]
        %v142 = vld [vmem:[%s2 + $0x8] sm:$0xff]
        %v143 = vld [vmem:[%s2 + $0x10] sm:$0xff]
        %v144 = vld [vmem:[%s2 + $0x18] sm:$0xff]
        %v145 = vld [vmem:[%s2 + $0x20] sm:$0xff]
        %v146 = vmax.f32 %v141, 1.0
        %v147 = vmax.f32 %v142, 1.0
        %v148 = vmax.f32 %v143, 1.0
        %v149 = vmax.f32 %v144, 1.0
        %v150 = vmax.f32 %v145, 1.0
        %v151 = vrcp.pop %v146
        %v152 = vrcp.pop %v147
        %v153 = vrcp.pop %v148
        %v154 = vrcp.pop %v149
        %v155 = vrcp.pop %v150
        %157 = vset.pattern.permute.xlu0 3
        %158 = vperm.xlu0 %157, %v151
        %v159 = vpop.permute.xlu0 %158
        %162 = vset.pattern.permute.xlu0 3
        %163 = vperm.xlu0 %162, %v152
        %v164 = vpop.permute.xlu0 %163
        %167 = vset.pattern.permute.xlu0 3
        %168 = vperm.xlu0 %167, %v153
        %v169 = vpop.permute.xlu0 %168
        %172 = vset.pattern.permute.xlu0 3
        %173 = vperm.xlu0 %172, %v154
        %v174 = vpop.permute.xlu0 %173
        %177 = vset.pattern.permute.xlu0 3
        %178 = vperm.xlu0 %177, %v155
        %v179 = vpop.permute.xlu0 %178
        %v181 = vmul.f32 %v141, %v159
        %v182 = vmul.f32 %v142, %v164
        %v183 = vmul.f32 %v143, %v169
        %v184 = vmul.f32 %v144, %v174
        %v185 = vmul.f32 %v145, %v179
        %vm186 = vcmask 31744
        %187 = vst.msk [vmem:[%s2] sm:$0xff] %vm186, %v181
        %188 = vst.msk [vmem:[%s2 + $0x8] sm:$0xff] %vm186, %v182
        %189 = vst.msk [vmem:[%s2 + $0x10] sm:$0xff] %vm186, %v183
        %190 = vst.msk [vmem:[%s2 + $0x18] sm:$0xff] %vm186, %v184
        %191 = vst.msk [vmem:[%s2 + $0x20] sm:$0xff] %vm186, %v185
      $region39: #{tpu_custom_call.1} parent=23 // pred_fallthru
        _
      // Predicated region
      $region40: #{tpu_custom_call.1} parent=23 // pred_check
        %p192 = pneg %p58
      $region41: #{tpu_custom_call.1} parent=23 // pred_check_branch
        %194 = sbr.rel (%p192) target = $region43
      $region42: #{tpu_custom_call.1} parent=23 // pred_region
        _
      $region43: #{tpu_custom_call.1} parent=23 // pred_fallthru
        _
      // Predicated region
      $region44: #{tpu_custom_call.1} parent=23 // pred_check
        %p195 = pneg %p58
      $region45: #{tpu_custom_call.1} parent=23 // pred_check_branch
        %197 = sbr.rel (%p195) target = $region47
      $region46: #{tpu_custom_call.1} parent=23 // pred_region
        _
      $region47: #{tpu_custom_call.1} parent=23 // pred_fallthru
        _
    $region24: #{tpu_custom_call.1} parent=5 // pred_fallthru
      _
    %p198 = scmp.le.s32.totalorder 2, %s14
    // Predicated region
    $region48: #{tpu_custom_call.1} parent=5 // pred_check
      %p199 = pneg %p198
    $region49: #{tpu_custom_call.1} parent=5 // pred_check_branch
      %201 = sbr.rel (%p199) target = $region51
    $region50: #{tpu_custom_call.1} parent=5 // pred_region
      %s202 = ssub.s32 %s14, 2
    $region51: #{tpu_custom_call.1} parent=5 // pred_fallthru
      _
  $region6: #{tpu_custom_call.1} parent=0 // loop_footer
    %s18 = sadd.s32 1, %s14
  $region7: #{tpu_custom_call.1} parent=0 // loop_footer_branch
    %13 = sbr.rel target = $region3
  $region8: #{tpu_custom_call.1} parent=0 // loop_exit
    _

</llo_original>
